<compile_context>
chip_gen: v7x
topology: tpu7x:2x2x1
jax: 0.10.0
libtpu: 0.0.40
codegen_flags: <defaults>
</compile_context>

<pallas_src>
import functools

import jax
import jax.numpy as jnp
from jax.experimental import pallas as pl
from jax.experimental.pallas import tpu as pltpu


# Cross-generation VMEM plan:
#   * working-set budget used when picking the batch tile `bm`
#   * explicit scoped-VMEM limit handed to Mosaic (v5e default scoped limit is
#     only 16 MiB; v7x physical VMEM is 64 MiB -> 48 MiB fits everywhere).
_VMEM_WORKING_SET_BUDGET = 40 * 1024 * 1024
_VMEM_LIMIT_BYTES = 48 * 1024 * 1024


def _round_up(x, m):
    return ((x + m - 1) // m) * m


def _pick_tk(d_pad, target_tk):
    """Largest K tile that is a multiple of 128, divides d_pad, and ~<= target."""
    m = d_pad // 128
    nk = max(1, -(-d_pad // target_tk))       # ceil(d_pad / target_tk)
    while m % nk:                             # terminates at nk == m (tk == 128)
        nk += 1
    return d_pad // nk


def _classifier_kernel(x_ref, we_ref, be_ref, wc_ref, bc_ref, o_ref, acc_ref):
    """One (batch_tile, k_tile) grid step.

    x_ref  : [bm, tk]        bf16   input tile
    we_ref : [tk, F_pad]     bf16   encoder weight tile (K-tiled)
    be_ref : [1,  F_pad]     f32    encoder bias (constant index -> fetched once)
    wc_ref : [F_pad, C_pad]  bf16   classifier weight (fetched once)
    bc_ref : [1,  C_pad]     f32    classifier bias (fetched once)
    o_ref  : [bm, C_pad]     f32    logits tile (written on last K step)
    acc_ref: [bm, F_pad]     f32    encoder pre-activation accumulator
    """
    k = pl.program_id(1)

    # Encoder partial matmul on the MXU, f32 accumulation.
    partial = jnp.dot(x_ref[...], we_ref[...], preferred_element_type=jnp.float32)

    @pl.when(k == 0)
    def _first():
        # Fold the zero-init into the first accumulate: direct store instead of
        # zeros + read-modify-write (saves a bm*F_pad f32 store+reload).
        acc_ref[...] = partial

    @pl.when(k > 0)
    def _accumulate():
        acc_ref[...] = acc_ref[...] + partial

    @pl.when(k == pl.num_programs(1) - 1)
    def _finalize():
        # bias + ReLU (encoder head), then classifier matmul + bias, all fused.
        feats = jnp.maximum(acc_ref[...] + be_ref[...], 0.0)
        logits = jnp.dot(feats.astype(wc_ref.dtype), wc_ref[...],
                         preferred_element_type=jnp.float32)
        o_ref[...] = (logits + bc_ref[...]).astype(o_ref.dtype)


def prepare_classifier_params(w_enc, b_enc, w_cls, b_cls):
    """One-time weight preparation (off the hot path).

    Pads feature / class / contraction dims to lane-dense multiples of 128 and
    casts the large operands to bf16 ONCE, so the per-forward call does not
    re-read f32 weights from HBM just to write a bf16 copy back.
    """
    D, F = w_enc.shape
    F2, C = w_cls.shape
    assert F2 == F, "w_cls fan-in must equal encoder feature_dim"
    D_pad = _round_up(D, 128)
    F_pad = _round_up(F, 128)
    C_pad = _round_up(C, 128)
    we_p = jnp.pad(jnp.asarray(w_enc, jnp.bfloat16),
                   ((0, D_pad - D), (0, F_pad - F)))
    be_p = jnp.pad(jnp.asarray(b_enc, jnp.float32).reshape(1, F),
                   ((0, 0), (0, F_pad - F)))
    wc_p = jnp.pad(jnp.asarray(w_cls, jnp.bfloat16),
                   ((0, F_pad - F), (0, C_pad - C)))
    bc_p = jnp.pad(jnp.asarray(b_cls, jnp.float32).reshape(1, C),
                   ((0, 0), (0, C_pad - C)))
    return we_p, be_p, wc_p, bc_p


@functools.partial(jax.jit, static_argnames=("n_classes", "bm_max", "target_tk"))
def classifier_forward(x_nchw, we_p, be_p, wc_p, bc_p, *, n_classes,
                       bm_max=512, target_tk=1024):
    """Fused encoder + linear-classifier forward.

    x_nchw : [B, C, H, W] float32
    we_p   : [D_pad, F_pad] bf16   (pre-padded, pre-cast encoder weight, x @ W)
    be_p   : [1, F_pad]     f32
    wc_p   : [F_pad, C_pad] bf16
    bc_p   : [1, C_pad]     f32
    returns: [B, n_classes] float32 logits
    """
    B = x_nchw.shape[0]
    x_flat = x_nchw.reshape(B, -1)            # glue: flatten NCHW -> [B, D]
    D = x_flat.shape[1]
    D_pad, F_pad = we_p.shape
    C_pad = wc_p.shape[1]
    assert D <= D_pad and n_classes <= C_pad

    # K tile: multiple of 128 that divides D_pad exactly (no wasted padding).
    tk = _pick_tk(D_pad, target_tk)
    nk = D_pad // tk

    # ---- batch tile `bm`: the primary knob ---------------------------------
    # Total encoder-weight HBM traffic ~= nb * D_pad * F_pad * 2B, so make bm
    # as large as the VMEM working-set budget allows.
    b8 = _round_up(max(B, 8), 8)
    n_buf = 2                                               # double buffering
    fixed = n_buf * tk * F_pad * 2                          # w_enc tile (bf16)
    fixed += n_buf * F_pad * C_pad * 2                      # w_cls (bf16)
    fixed += n_buf * (F_pad + C_pad) * 4                    # biases (f32)
    per_row = F_pad * 4 + n_buf * tk * 2 + n_buf * C_pad * 4  # acc + x + out
    bm_cap = (_VMEM_WORKING_SET_BUDGET - fixed) // per_row
    bm_cap = max(8, (bm_cap // 8) * 8)
    bm = max(8, min(bm_max, b8, bm_cap))
    if bm >= b8 and b8 >= 512:
        # Keep >= 2 batch tiles (each >= 256 rows) so the "parallel" batch axis
        # can actually shard across two TensorCores (v7x megacore).
        bm = _round_up((b8 + 1) // 2, 8)
    B_pad = _round_up(B, bm)
    nb = B_pad // bm

    # Only the activation is cast/padded per call (zeros are exact no-ops).
    x_p = jnp.pad(x_flat.astype(jnp.bfloat16),
                  ((0, B_pad - B), (0, D_pad - D)))

    cost = pl.CostEstimate(
        flops=2 * B_pad * D_pad * F_pad + 2 * B_pad * F_pad * C_pad,
        transcendentals=0,
        bytes_accessed=(B_pad * D_pad * 2            # x (bf16, streamed once)
                        + nb * D_pad * F_pad * 2     # w_enc re-read per batch tile
                        + F_pad * C_pad * 2          # w_cls (fetched once)
                        + (F_pad + C_pad) * 4        # biases
                        + B_pad * C_pad * 4),        # logits writeback
    )

    out_padded = pl.pallas_call(
        _classifier_kernel,
        out_shape=jax.ShapeDtypeStruct((B_pad, C_pad), jnp.float32),
        grid_spec=pltpu.PrefetchScalarGridSpec(
            num_scalar_prefetch=0,
            grid=(nb, nk),
            in_specs=[
                pl.BlockSpec((bm, tk), lambda b, k: (b, k)),        # x
                pl.BlockSpec((tk, F_pad), lambda b, k: (k, 0)),     # w_enc
                pl.BlockSpec((1, F_pad), lambda b, k: (0, 0)),      # b_enc
                pl.BlockSpec((F_pad, C_pad), lambda b, k: (0, 0)),  # w_cls
                pl.BlockSpec((1, C_pad), lambda b, k: (0, 0)),      # b_cls
            ],
            out_specs=pl.BlockSpec((bm, C_pad), lambda b, k: (b, 0)),
            scratch_shapes=[pltpu.VMEM((bm, F_pad), jnp.float32)],
        ),
        compiler_params=pltpu.CompilerParams(
            dimension_semantics=("parallel", "arbitrary"),
            vmem_limit_bytes=_VMEM_LIMIT_BYTES),
        cost_estimate=cost,
    )(x_p, we_p, be_p, wc_p, bc_p)

    return out_padded[:B, :n_classes]


def _init_linear(key, fan_in, fan_out):
    """Deterministic init mimicking nn.Linear's uniform(-1/sqrt(fan_in), ...)."""
    kw, kb = jax.random.split(key)
    bound = 1.0 / jnp.sqrt(jnp.float32(fan_in))
    # stored transposed: [fan_in, fan_out] so the kernel computes x @ W
    w = jax.random.uniform(kw, (fan_in, fan_out), jnp.float32, -bound, bound)
    b = jax.random.uniform(kb, (1, fan_out), jnp.float32, -bound, bound)
    return w, b


if __name__ == "__main__":
    # Small shapes consistent with the module's forward.
    B, C, H, W = 2, 4, 16, 16
    D = C * H * W          # flattened input dim seen by the synthetic encoder
    feature_dim = 32
    n_classes = 8

    key = jax.random.PRNGKey(0)
    kx, kenc, kcls = jax.random.split(key, 3)

    x = jax.random.normal(kx, (B, C, H, W), jnp.float32)

    # TODO(synk): the real encoder is injected externally in the PyTorch code;
    # a synthetic flatten->linear->ReLU encoder stands in for it here.
    w_enc, b_enc = _init_linear(kenc, D, feature_dim)
    w_cls, b_cls = _init_linear(kcls, feature_dim, n_classes)

    # One-time weight prep (pad + bf16 cast), off the per-call hot path.
    we_p, be_p, wc_p, bc_p = prepare_classifier_params(w_enc, b_enc, w_cls, b_cls)
    we_p, be_p, wc_p, bc_p = jax.block_until_ready((we_p, be_p, wc_p, bc_p))

    out = classifier_forward(x, we_p, be_p, wc_p, bc_p, n_classes=n_classes)
    out = jax.block_until_ready(out)

    # Pure-JAX reference with the same bf16-input / f32-accumulation semantics.
    xb = x.reshape(B, -1).astype(jnp.bfloat16).astype(jnp.float32)
    web = w_enc.astype(jnp.bfloat16).astype(jnp.float32)
    wcb = w_cls.astype(jnp.bfloat16).astype(jnp.float32)
    feats_ref = jnp.maximum(xb @ web + b_enc, 0.0)
    ref = feats_ref.astype(jnp.bfloat16).astype(jnp.float32) @ wcb + b_cls

    assert out.shape == (B, n_classes)
    assert jnp.allclose(out, ref, atol=2e-2, rtol=2e-2), (
        jnp.max(jnp.abs(out - ref)))

    print("KERNEL_OK")
</pallas_src>

<mosaic_0001>
module attributes {stable_mosaic.version = 11 : i64} {
  func.func @_classifier_kernel(%arg0: i32, %arg1: i32, %arg2: memref<8x1024xbf16, #tpu.memory_space<vmem>>, %arg3: memref<1024x128xbf16, #tpu.memory_space<vmem>>, %arg4: memref<1x128xf32, #tpu.memory_space<vmem>>, %arg5: memref<128x128xbf16, #tpu.memory_space<vmem>>, %arg6: memref<1x128xf32, #tpu.memory_space<vmem>>, %arg7: memref<8x128xf32, #tpu.memory_space<vmem>>, %arg8: memref<8x128xf32, #tpu.memory_space<vmem>>) attributes {dimension_semantics = [#tpu.dimension_semantics<parallel>, #tpu.dimension_semantics<arbitrary>], iteration_bounds = array<i64: 1, 1>, scalar_prefetch = 0 : i64, scratch_operands = 1 : i64, tpu.core_type = #tpu.core_type<tc>, window_params = [{transform_indices = @transform_0, window_bounds = array<i64: 8, 1024>}, {transform_indices = @transform_1, window_bounds = array<i64: 1024, 128>}, {pipeline_mode = #tpu.pipeline_mode<synchronous>, transform_indices = @transform_2, window_bounds = array<i64: 1, 128>}, {pipeline_mode = #tpu.pipeline_mode<synchronous>, transform_indices = @transform_3, window_bounds = array<i64: 128, 128>}, {pipeline_mode = #tpu.pipeline_mode<synchronous>, transform_indices = @transform_4, window_bounds = array<i64: 1, 128>}, {transform_indices = @transform_5, window_bounds = array<i64: 8, 128>}]} {
    %c0 = arith.constant 0 : index
    %c0_0 = arith.constant 0 : index
    %0 = vector.load %arg2[%c0, %c0_0] : memref<8x1024xbf16, #tpu.memory_space<vmem>>, vector<8x1024xbf16>
    %c0_1 = arith.constant 0 : index
    %c0_2 = arith.constant 0 : index
    %1 = vector.load %arg3[%c0_1, %c0_2] : memref<1024x128xbf16, #tpu.memory_space<vmem>>, vector<1024x128xbf16>
    %cst = arith.constant dense<0.000000e+00> : vector<8x128xf32>
    %2 = tpu.matmul %0, %1, %cst {dimension_numbers = #tpu.dot_dimension_numbers<[1], [0], [0], [1], [0, 0, 1, 1], [], []>} : vector<8x1024xbf16>, vector<1024x128xbf16>, vector<8x128xf32> -> vector<8x128xf32>
    %c0_i32 = arith.constant 0 : i32
    %3 = arith.cmpi eq, %arg1, %c0_i32 : i32
    %4 = arith.extui %3 : i1 to i32
    %c0_i32_3 = arith.constant 0 : i32
    %5 = arith.cmpi ne, %4, %c0_i32_3 : i32
    scf.if %5 {
      %c0_8 = arith.constant 0 : index
      %c0_9 = arith.constant 0 : index
      %12 = vector.load %arg8[%c0_8, %c0_9] : memref<8x128xf32, #tpu.memory_space<vmem>>, vector<8x128xf32>
      tpu.vector_store %arg8[%c0_8, %c0_9], %2 {strides = array<i32>} : memref<8x128xf32, #tpu.memory_space<vmem>>, vector<8x128xf32>,
    } else {
    }
    %c0_i32_4 = arith.constant 0 : i32
    %6 = arith.cmpi sgt, %arg1, %c0_i32_4 : i32
    %7 = arith.extui %6 : i1 to i32
    %c0_i32_5 = arith.constant 0 : i32
    %8 = arith.cmpi ne, %7, %c0_i32_5 : i32
    scf.if %8 {
      %c0_8 = arith.constant 0 : index
      %c0_9 = arith.constant 0 : index
      %12 = vector.load %arg8[%c0_8, %c0_9] : memref<8x128xf32, #tpu.memory_space<vmem>>, vector<8x128xf32>
      %13 = arith.addf %12, %2 : vector<8x128xf32>
      %c0_10 = arith.constant 0 : index
      %c0_11 = arith.constant 0 : index
      %14 = vector.load %arg8[%c0_10, %c0_11] : memref<8x128xf32, #tpu.memory_space<vmem>>, vector<8x128xf32>
      tpu.vector_store %arg8[%c0_10, %c0_11], %13 {strides = array<i32>} : memref<8x128xf32, #tpu.memory_space<vmem>>, vector<8x128xf32>,
    } else {
    }
    %c0_i32_6 = arith.constant 0 : i32
    %9 = arith.cmpi eq, %arg1, %c0_i32_6 : i32
    %10 = arith.extui %9 : i1 to i32
    %c0_i32_7 = arith.constant 0 : i32
    %11 = arith.cmpi ne, %10, %c0_i32_7 : i32
    scf.if %11 {
      %c0_8 = arith.constant 0 : index
      %c0_9 = arith.constant 0 : index
      %12 = vector.load %arg8[%c0_8, %c0_9] : memref<8x128xf32, #tpu.memory_space<vmem>>, vector<8x128xf32>
      %c0_10 = arith.constant 0 : index
      %c0_11 = arith.constant 0 : index
      %13 = vector.load %arg4[%c0_10, %c0_11] : memref<1x128xf32, #tpu.memory_space<vmem>>, vector<1x128xf32>
      %14 = vector.broadcast %13 : vector<1x128xf32> to vector<8x128xf32>
      %15 = arith.addf %12, %14 : vector<8x128xf32>
      %cst_12 = arith.constant 0.000000e+00 : f32
      %16 = vector.broadcast %cst_12 : f32 to vector<8x128xf32>
      %17 = arith.maximumf %15, %16 : vector<8x128xf32>
      %18 = arith.truncf %17 : vector<8x128xf32> to vector<8x128xbf16>
      %c0_13 = arith.constant 0 : index
      %c0_14 = arith.constant 0 : index
      %19 = vector.load %arg5[%c0_13, %c0_14] : memref<128x128xbf16, #tpu.memory_space<vmem>>, vector<128x128xbf16>
      %cst_15 = arith.constant dense<0.000000e+00> : vector<8x128xf32>
      %20 = tpu.matmul %18, %19, %cst_15 {dimension_numbers = #tpu.dot_dimension_numbers<[1], [0], [0], [1], [0, 0, 1, 1], [], []>} : vector<8x128xbf16>, vector<128x128xbf16>, vector<8x128xf32> -> vector<8x128xf32>
      %c0_16 = arith.constant 0 : index
      %c0_17 = arith.constant 0 : index
      %21 = vector.load %arg6[%c0_16, %c0_17] : memref<1x128xf32, #tpu.memory_space<vmem>>, vector<1x128xf32>
      %22 = vector.broadcast %21 : vector<1x128xf32> to vector<8x128xf32>
      %23 = arith.addf %20, %22 : vector<8x128xf32>
      %c0_18 = arith.constant 0 : index
      %c0_19 = arith.constant 0 : index
      %24 = vector.load %arg7[%c0_18, %c0_19] : memref<8x128xf32, #tpu.memory_space<vmem>>, vector<8x128xf32>
      tpu.vector_store %arg7[%c0_18, %c0_19], %23 {strides = array<i32>} : memref<8x128xf32, #tpu.memory_space<vmem>>, vector<8x128xf32>,
    } else {
    }
    return
  }
  func.func @transform_0(%arg0: i32, %arg1: i32) -> (i32, i32) {
    %c0_i32 = arith.constant 0 : i32
    return %arg0, %arg1 : i32, i32
  }
  func.func @transform_1(%arg0: i32, %arg1: i32) -> (i32, i32) {
    %c0_i32 = arith.constant 0 : i32
    %c0_i32_0 = arith.constant 0 : i32
    return %arg1, %c0_i32 : i32, i32
  }
  func.func @transform_2(%arg0: i32, %arg1: i32) -> (i32, i32) {
    %c0_i32 = arith.constant 0 : i32
    %c0_i32_0 = arith.constant 0 : i32
    %c0_i32_1 = arith.constant 0 : i32
    return %c0_i32, %c0_i32_0 : i32, i32
  }
  func.func @transform_3(%arg0: i32, %arg1: i32) -> (i32, i32) {
    %c0_i32 = arith.constant 0 : i32
    %c0_i32_0 = arith.constant 0 : i32
    %c0_i32_1 = arith.constant 0 : i32
    return %c0_i32, %c0_i32_0 : i32, i32
  }
  func.func @transform_4(%arg0: i32, %arg1: i32) -> (i32, i32) {
    %c0_i32 = arith.constant 0 : i32
    %c0_i32_0 = arith.constant 0 : i32
    %c0_i32_1 = arith.constant 0 : i32
    return %c0_i32, %c0_i32_0 : i32, i32
  }
  func.func @transform_5(%arg0: i32, %arg1: i32) -> (i32, i32) {
    %c0_i32 = arith.constant 0 : i32
    %c0_i32_0 = arith.constant 0 : i32
    return %arg0, %c0_i32 : i32, i32
  }
}

</mosaic_0001>

<llo_original>
// kernel: classifier_forward.1
$region0: #{classifier_forward.1}
  #allocation0 [shape = 'u32[]', space=smem, size = 0x4, offset = 0x4, fixed_abs, tag = 'smem constant byte address 0x4 - core index']
  #allocation1 [shape = 'u32[144,128]{1,0:T(1,128)}', space=vmem, size = 0x12000, scoped, tag = 'internal scratch']
  #allocation2 [shape = 'f32[8,128]{1,0:T(8,128)}', space=vmem, size = 0x1000, scoped, tag = 'scratch operand']
  %s0 = inlined_call_operand.vmem [shape: bf16[8,1024], index: 0, kind: input, shape index: {}]
  %s1 = inlined_call_operand.hbm [shape: bf16[1024,128], index: 1, kind: input, shape index: {}]
  %s2 = inlined_call_operand.vmem [shape: f32[1,128], index: 2, kind: input, shape index: {}]
  %s3 = inlined_call_operand.vmem [shape: bf16[128,128], index: 3, kind: input, shape index: {}]
  %s4 = inlined_call_operand.vmem [shape: f32[1,128], index: 4, kind: input, shape index: {}]
  %s5 = inlined_call_operand.vmem [shape: f32[8,128], index: 5, kind: output, shape index: {}]
  %s6 = sld [smem:[#allocation0]]
  $region46: #{classifier_forward.1} parent=0
    _
  %s8 = ssub.s32 1, %s6
  %s9 = scalar_select 0, %s8, %s6
  $region1: #{classifier_forward.1} parent=0
    #allocation3 [shape = 'u8[262144]{0}', space=vmem, size = 0x40000, scoped, tag = 'input window, operand 1, single buffered']
    #allocation4 [shape = 's32[1]{0}', space=sflag, size = 0x4, scoped, tag = 'scoped memory for classifier_forward.1']
    %10 = vsyncpa [#allocation4], 0
    // Predicated region
    $region2: #{classifier_forward.1} parent=1 // pred_check
      _
    $region3: #{classifier_forward.1} parent=1 // pred_check_branch
      %12 = sbr.rel (0) target = $region5
    $region4: #{classifier_forward.1} parent=1 // pred_region
      _
    $region5: #{classifier_forward.1} parent=1 // pred_fallthru
      _
    // Predicated region
    $region6: #{classifier_forward.1} parent=1 // pred_check
      _
    $region7: #{classifier_forward.1} parent=1 // pred_check_branch
      %14 = sbr.rel (0) target = $region9
    $region8: #{classifier_forward.1} parent=1 // pred_region
      %s16 = ssub.s32 8192, 8192
      %17 = vsyncadd [#allocation4], %s16
      %s18 = sshll.u32 [#allocation3], 4
      %s19 = int_to_ptr.vmem [resolvable:$true] %s18
      %24 = dma.hbm_to_vmem [thread:$0]  %s1, 8192, %s19, [#allocation4], 64, 64, 4
    $region9: #{classifier_forward.1} parent=1 // pred_fallthru
      _
    // Predicated region
    $region10: #{classifier_forward.1} parent=1 // pred_check
      _
    $region11: #{classifier_forward.1} parent=1 // pred_check_branch
      %26 = sbr.rel (0) target = $region13
    $region12: #{classifier_forward.1} parent=1 // pred_region
      _
    $region13: #{classifier_forward.1} parent=1 // pred_fallthru
      _
    // Predicated region
    $region14: #{classifier_forward.1} parent=1 // pred_check
      _
    $region15: #{classifier_forward.1} parent=1 // pred_check_branch
      %28 = sbr.rel (0) target = $region17
    $region16: #{classifier_forward.1} parent=1 // pred_region
      _
    $region17: #{classifier_forward.1} parent=1 // pred_fallthru
      _
    // Predicated region
    $region18: #{classifier_forward.1} parent=1 // pred_check
      _
    $region19: #{classifier_forward.1} parent=1 // pred_check_branch
      %30 = sbr.rel (0) target = $region21
    $region20: #{classifier_forward.1} parent=1 // pred_region
      _
    $region21: #{classifier_forward.1} parent=1 // pred_fallthru
      _
    // Predicated region
    $region22: #{classifier_forward.1} parent=1 // pred_check
      _
    $region23: #{classifier_forward.1} parent=1 // pred_check_branch
      %32 = sbr.rel (0) target = $region25
    $region24: #{classifier_forward.1} parent=1 // pred_region
      %33 = dma.done [#allocation4], 8192
    $region25: #{classifier_forward.1} parent=1 // pred_fallthru
      _
    %v35 = vld [vmem:[%s0] sm:$0xff]
    %v36 = vld [vmem:[%s0 + $0x8] sm:$0xff]
    %v37 = vld [vmem:[%s0 + $0x10] sm:$0xff]
    %v38 = vld [vmem:[%s0 + $0x18] sm:$0xff]
    %v39 = vld [vmem:[#allocation3] sm:$0xf]
    %v40 = vld [vmem:[#allocation3 + $0x4] sm:$0xf]
    %v41 = vld [vmem:[#allocation3 + $0x8] sm:$0xf]
    %v42 = vld [vmem:[#allocation3 + $0xc] sm:$0xf]
    %v43 = vld [vmem:[#allocation3 + $0x10] sm:$0xf]
    %v44 = vld [vmem:[#allocation3 + $0x14] sm:$0xf]
    %v45 = vld [vmem:[#allocation3 + $0x18] sm:$0xf]
    %v46 = vld [vmem:[#allocation3 + $0x1c] sm:$0xf]
    %v47 = vld [vmem:[#allocation3 + $0x20] sm:$0xf]
    %v48 = vld [vmem:[#allocation3 + $0x24] sm:$0xf]
    %v49 = vld [vmem:[#allocation3 + $0x28] sm:$0xf]
    %v50 = vld [vmem:[#allocation3 + $0x2c] sm:$0xf]
    %v51 = vld [vmem:[#allocation3 + $0x30] sm:$0xf]
    %v52 = vld [vmem:[#allocation3 + $0x34] sm:$0xf]
    %v53 = vld [vmem:[#allocation3 + $0x38] sm:$0xf]
    %v54 = vld [vmem:[#allocation3 + $0x3c] sm:$0xf]
    %v55 = vld [vmem:[#allocation3 + $0x40] sm:$0xf]
    %v56 = vld [vmem:[#allocation3 + $0x44] sm:$0xf]
    %v57 = vld [vmem:[#allocation3 + $0x48] sm:$0xf]
    %v58 = vld [vmem:[#allocation3 + $0x4c] sm:$0xf]
    %v59 = vld [vmem:[#allocation3 + $0x50] sm:$0xf]
    %v60 = vld [vmem:[#allocation3 + $0x54] sm:$0xf]
    %v61 = vld [vmem:[#allocation3 + $0x58] sm:$0xf]
    %v62 = vld [vmem:[#allocation3 + $0x5c] sm:$0xf]
    %v63 = vld [vmem:[#allocation3 + $0x60] sm:$0xf]
    %v64 = vld [vmem:[#allocation3 + $0x64] sm:$0xf]
    %v65 = vld [vmem:[#allocation3 + $0x68] sm:$0xf]
    %v66 = vld [vmem:[#allocation3 + $0x6c] sm:$0xf]
    %v67 = vld [vmem:[#allocation3 + $0x70] sm:$0xf]
    %v68 = vld [vmem:[#allocation3 + $0x74] sm:$0xf]
    %v69 = vld [vmem:[#allocation3 + $0x78] sm:$0xf]
    %v70 = vld [vmem:[#allocation3 + $0x7c] sm:$0xf]
    %v71 = vld [vmem:[#allocation3 + $0x80] sm:$0xf]
    %v72 = vld [vmem:[#allocation3 + $0x84] sm:$0xf]
    %v73 = vld [vmem:[#allocation3 + $0x88] sm:$0xf]
    %v74 = vld [vmem:[#allocation3 + $0x8c] sm:$0xf]
    %v75 = vld [vmem:[#allocation3 + $0x90] sm:$0xf]
    %v76 = vld [vmem:[#allocation3 + $0x94] sm:$0xf]
    %v77 = vld [vmem:[#allocation3 + $0x98] sm:$0xf]
    %v78 = vld [vmem:[#allocation3 + $0x9c] sm:$0xf]
    %v79 = vld [vmem:[#allocation3 + $0xa0] sm:$0xf]
    %v80 = vld [vmem:[#allocation3 + $0xa4] sm:$0xf]
    %v81 = vld [vmem:[#allocation3 + $0xa8] sm:$0xf]
    %v82 = vld [vmem:[#allocation3 + $0xac] sm:$0xf]
    %v83 = vld [vmem:[#allocation3 + $0xb0] sm:$0xf]
    %v84 = vld [vmem:[#allocation3 + $0xb4] sm:$0xf]
    %v85 = vld [vmem:[#allocation3 + $0xb8] sm:$0xf]
    %v86 = vld [vmem:[#allocation3 + $0xbc] sm:$0xf]
    %v87 = vld [vmem:[#allocation3 + $0xc0] sm:$0xf]
    %v88 = vld [vmem:[#allocation3 + $0xc4] sm:$0xf]
    %v89 = vld [vmem:[#allocation3 + $0xc8] sm:$0xf]
    %v90 = vld [vmem:[#allocation3 + $0xcc] sm:$0xf]
    %v91 = vld [vmem:[#allocation3 + $0xd0] sm:$0xf]
    %v92 = vld [vmem:[#allocation3 + $0xd4] sm:$0xf]
    %v93 = vld [vmem:[#allocation3 + $0xd8] sm:$0xf]
    %v94 = vld [vmem:[#allocation3 + $0xdc] sm:$0xf]
    %v95 = vld [vmem:[#allocation3 + $0xe0] sm:$0xf]
    %v96 = vld [vmem:[#allocation3 + $0xe4] sm:$0xf]
    %v97 = vld [vmem:[#allocation3 + $0xe8] sm:$0xf]
    %v98 = vld [vmem:[#allocation3 + $0xec] sm:$0xf]
    %v99 = vld [vmem:[#allocation3 + $0xf0] sm:$0xf]
    %v100 = vld [vmem:[#allocation3 + $0xf4] sm:$0xf]
    %v101 = vld [vmem:[#allocation3 + $0xf8] sm:$0xf]
    %v102 = vld [vmem:[#allocation3 + $0xfc] sm:$0xf]
    %v103 = vld [vmem:[#allocation3 + $0x100] sm:$0xf]
    %v104 = vld [vmem:[#allocation3 + $0x104] sm:$0xf]
    %v105 = vld [vmem:[#allocation3 + $0x108] sm:$0xf]
    %v106 = vld [vmem:[#allocation3 + $0x10c] sm:$0xf]
    %v107 = vld [vmem:[#allocation3 + $0x110] sm:$0xf]
    %v108 = vld [vmem:[#allocation3 + $0x114] sm:$0xf]
    %v109 = vld [vmem:[#allocation3 + $0x118] sm:$0xf]
    %v110 = vld [vmem:[#allocation3 + $0x11c] sm:$0xf]
    %v111 = vld [vmem:[#allocation3 + $0x120] sm:$0xf]
    %v112 = vld [vmem:[#allocation3 + $0x124] sm:$0xf]
    %v113 = vld [vmem:[#allocation3 + $0x128] sm:$0xf]
    %v114 = vld [vmem:[#allocation3 + $0x12c] sm:$0xf]
    %v115 = vld [vmem:[#allocation3 + $0x130] sm:$0xf]
    %v116 = vld [vmem:[#allocation3 + $0x134] sm:$0xf]
    %v117 = vld [vmem:[#allocation3 + $0x138] sm:$0xf]
    %v118 = vld [vmem:[#allocation3 + $0x13c] sm:$0xf]
    %v119 = vld [vmem:[#allocation3 + $0x140] sm:$0xf]
    %v120 = vld [vmem:[#allocation3 + $0x144] sm:$0xf]
    %v121 = vld [vmem:[#allocation3 + $0x148] sm:$0xf]
    %v122 = vld [vmem:[#allocation3 + $0x14c] sm:$0xf]
    %v123 = vld [vmem:[#allocation3 + $0x150] sm:$0xf]
    %v124 = vld [vmem:[#allocation3 + $0x154] sm:$0xf]
    %v125 = vld [vmem:[#allocation3 + $0x158] sm:$0xf]
    %v126 = vld [vmem:[#allocation3 + $0x15c] sm:$0xf]
    %v127 = vld [vmem:[#allocation3 + $0x160] sm:$0xf]
    %v128 = vld [vmem:[#allocation3 + $0x164] sm:$0xf]
    %v129 = vld [vmem:[#allocation3 + $0x168] sm:$0xf]
    %v130 = vld [vmem:[#allocation3 + $0x16c] sm:$0xf]
    %v131 = vld [vmem:[#allocation3 + $0x170] sm:$0xf]
    %v132 = vld [vmem:[#allocation3 + $0x174] sm:$0xf]
    %v133 = vld [vmem:[#allocation3 + $0x178] sm:$0xf]
    %v134 = vld [vmem:[#allocation3 + $0x17c] sm:$0xf]
    %v135 = vld [vmem:[#allocation3 + $0x180] sm:$0xf]
    %v136 = vld [vmem:[#allocation3 + $0x184] sm:$0xf]
    %v137 = vld [vmem:[#allocation3 + $0x188] sm:$0xf]
    %v138 = vld [vmem:[#allocation3 + $0x18c] sm:$0xf]
    %v139 = vld [vmem:[#allocation3 + $0x190] sm:$0xf]
    %v140 = vld [vmem:[#allocation3 + $0x194] sm:$0xf]
    %v141 = vld [vmem:[#allocation3 + $0x198] sm:$0xf]
    %v142 = vld [vmem:[#allocation3 + $0x19c] sm:$0xf]
    %v143 = vld [vmem:[#allocation3 + $0x1a0] sm:$0xf]
    %v144 = vld [vmem:[#allocation3 + $0x1a4] sm:$0xf]
    %v145 = vld [vmem:[#allocation3 + $0x1a8] sm:$0xf]
    %v146 = vld [vmem:[#allocation3 + $0x1ac] sm:$0xf]
    %v147 = vld [vmem:[#allocation3 + $0x1b0] sm:$0xf]
    %v148 = vld [vmem:[#allocation3 + $0x1b4] sm:$0xf]
    %v149 = vld [vmem:[#allocation3 + $0x1b8] sm:$0xf]
    %v150 = vld [vmem:[#allocation3 + $0x1bc] sm:$0xf]
    %v151 = vld [vmem:[#allocation3 + $0x1c0] sm:$0xf]
    %v152 = vld [vmem:[#allocation3 + $0x1c4] sm:$0xf]
    %v153 = vld [vmem:[#allocation3 + $0x1c8] sm:$0xf]
    %v154 = vld [vmem:[#allocation3 + $0x1cc] sm:$0xf]
    %v155 = vld [vmem:[#allocation3 + $0x1d0] sm:$0xf]
    %v156 = vld [vmem:[#allocation3 + $0x1d4] sm:$0xf]
    %v157 = vld [vmem:[#allocation3 + $0x1d8] sm:$0xf]
    %v158 = vld [vmem:[#allocation3 + $0x1dc] sm:$0xf]
    %v159 = vld [vmem:[#allocation3 + $0x1e0] sm:$0xf]
    %v160 = vld [vmem:[#allocation3 + $0x1e4] sm:$0xf]
    %v161 = vld [vmem:[#allocation3 + $0x1e8] sm:$0xf]
    %v162 = vld [vmem:[#allocation3 + $0x1ec] sm:$0xf]
    %v163 = vld [vmem:[#allocation3 + $0x1f0] sm:$0xf]
    %v164 = vld [vmem:[#allocation3 + $0x1f4] sm:$0xf]
    %v165 = vld [vmem:[#allocation3 + $0x1f8] sm:$0xf]
    %v166 = vld [vmem:[#allocation3 + $0x1fc] sm:$0xf]
    %v171 = vunpack.c.l.b16 %v35
    %v172 = vunpack.c.h.b16 %v35
    %v173 = vunpack.c.l.b16 %v36
    %v174 = vunpack.c.h.b16 %v36
    %v175 = vunpack.c.l.b16 %v37
    %v176 = vunpack.c.h.b16 %v37
    %v177 = vunpack.c.l.b16 %v38
    %v178 = vunpack.c.h.b16 %v38
    %v179 = vpack.c.b16 %v171, %v171
    %v180 = vpack.c.b16 %v172, %v172
    %v181 = vpack.c.b16 %v173, %v173
    %v182 = vpack.c.b16 %v174, %v174
    %v183 = vpack.c.b16 %v175, %v175
    %v184 = vpack.c.b16 %v176, %v176
    %v185 = vpack.c.b16 %v177, %v177
    %v186 = vpack.c.b16 %v178, %v178
    %v323 = vunpack.c.l.b16 %v39
    %v324 = vunpack.c.l.b16 %v40
    %v325 = vunpack.c.l.b16 %v41
    %v326 = vunpack.c.l.b16 %v42
    %v327 = vunpack.c.l.b16 %v43
    %v328 = vunpack.c.l.b16 %v44
    %v329 = vunpack.c.l.b16 %v45
    %v330 = vunpack.c.l.b16 %v46
    %v331 = vunpack.c.l.b16 %v47
    %v332 = vunpack.c.l.b16 %v48
    %v333 = vunpack.c.l.b16 %v49
    %v334 = vunpack.c.l.b16 %v50
    %v335 = vunpack.c.l.b16 %v51
    %v336 = vunpack.c.l.b16 %v52
    %v337 = vunpack.c.l.b16 %v53
    %v338 = vunpack.c.l.b16 %v54
    %v339 = vunpack.c.l.b16 %v55
    %v340 = vunpack.c.l.b16 %v56
    %v341 = vunpack.c.l.b16 %v57
    %v342 = vunpack.c.l.b16 %v58
    %v343 = vunpack.c.l.b16 %v59
    %v344 = vunpack.c.l.b16 %v60
    %v345 = vunpack.c.l.b16 %v61
    %v346 = vunpack.c.l.b16 %v62
    %v347 = vunpack.c.l.b16 %v63
    %v348 = vunpack.c.l.b16 %v64
    %v349 = vunpack.c.l.b16 %v65
    %v350 = vunpack.c.l.b16 %v66
    %v351 = vunpack.c.l.b16 %v67
    %v352 = vunpack.c.l.b16 %v68
    %v353 = vunpack.c.l.b16 %v69
    %v354 = vunpack.c.l.b16 %v70
    %v355 = vunpack.c.l.b16 %v71
    %v356 = vunpack.c.l.b16 %v72
    %v357 = vunpack.c.l.b16 %v73
    %v358 = vunpack.c.l.b16 %v74
    %v359 = vunpack.c.l.b16 %v75
    %v360 = vunpack.c.l.b16 %v76
    %v361 = vunpack.c.l.b16 %v77
    %v362 = vunpack.c.l.b16 %v78
    %v363 = vunpack.c.l.b16 %v79
    %v364 = vunpack.c.l.b16 %v80
    %v365 = vunpack.c.l.b16 %v81
    %v366 = vunpack.c.l.b16 %v82
    %v367 = vunpack.c.l.b16 %v83
    %v368 = vunpack.c.l.b16 %v84
    %v369 = vunpack.c.l.b16 %v85
    %v370 = vunpack.c.l.b16 %v86
    %v371 = vunpack.c.l.b16 %v87
    %v372 = vunpack.c.l.b16 %v88
    %v373 = vunpack.c.l.b16 %v89
    %v374 = vunpack.c.l.b16 %v90
    %v375 = vunpack.c.l.b16 %v91
    %v376 = vunpack.c.l.b16 %v92
    %v377 = vunpack.c.l.b16 %v93
    %v378 = vunpack.c.l.b16 %v94
    %v379 = vunpack.c.l.b16 %v95
    %v380 = vunpack.c.l.b16 %v96
    %v381 = vunpack.c.l.b16 %v97
    %v382 = vunpack.c.l.b16 %v98
    %v383 = vunpack.c.l.b16 %v99
    %v384 = vunpack.c.l.b16 %v100
    %v385 = vunpack.c.l.b16 %v101
    %v386 = vunpack.c.l.b16 %v102
    %v387 = vunpack.c.l.b16 %v103
    %v388 = vunpack.c.l.b16 %v104
    %v389 = vunpack.c.l.b16 %v105
    %v390 = vunpack.c.l.b16 %v106
    %v391 = vunpack.c.l.b16 %v107
    %v392 = vunpack.c.l.b16 %v108
    %v393 = vunpack.c.l.b16 %v109
    %v394 = vunpack.c.l.b16 %v110
    %v395 = vunpack.c.l.b16 %v111
    %v396 = vunpack.c.l.b16 %v112
    %v397 = vunpack.c.l.b16 %v113
    %v398 = vunpack.c.l.b16 %v114
    %v399 = vunpack.c.l.b16 %v115
    %v400 = vunpack.c.l.b16 %v116
    %v401 = vunpack.c.l.b16 %v117
    %v402 = vunpack.c.l.b16 %v118
    %v403 = vunpack.c.l.b16 %v119
    %v404 = vunpack.c.l.b16 %v120
    %v405 = vunpack.c.l.b16 %v121
    %v406 = vunpack.c.l.b16 %v122
    %v407 = vunpack.c.l.b16 %v123
    %v408 = vunpack.c.l.b16 %v124
    %v409 = vunpack.c.l.b16 %v125
    %v410 = vunpack.c.l.b16 %v126
    %v411 = vunpack.c.l.b16 %v127
    %v412 = vunpack.c.l.b16 %v128
    %v413 = vunpack.c.l.b16 %v129
    %v414 = vunpack.c.l.b16 %v130
    %v415 = vunpack.c.l.b16 %v131
    %v416 = vunpack.c.l.b16 %v132
    %v417 = vunpack.c.l.b16 %v133
    %v418 = vunpack.c.l.b16 %v134
    %v419 = vunpack.c.l.b16 %v135
    %v420 = vunpack.c.l.b16 %v136
    %v421 = vunpack.c.l.b16 %v137
    %v422 = vunpack.c.l.b16 %v138
    %v423 = vunpack.c.l.b16 %v139
    %v424 = vunpack.c.l.b16 %v140
    %v425 = vunpack.c.l.b16 %v141
    %v426 = vunpack.c.l.b16 %v142
    %v427 = vunpack.c.l.b16 %v143
    %v428 = vunpack.c.l.b16 %v144
    %v429 = vunpack.c.l.b16 %v145
    %v430 = vunpack.c.l.b16 %v146
    %v431 = vunpack.c.l.b16 %v147
    %v432 = vunpack.c.l.b16 %v148
    %v433 = vunpack.c.l.b16 %v149
    %v434 = vunpack.c.l.b16 %v150
    %v435 = vunpack.c.l.b16 %v151
    %v436 = vunpack.c.l.b16 %v152
    %v437 = vunpack.c.l.b16 %v153
    %v438 = vunpack.c.l.b16 %v154
    %v439 = vunpack.c.l.b16 %v155
    %v440 = vunpack.c.l.b16 %v156
    %v441 = vunpack.c.l.b16 %v157
    %v442 = vunpack.c.l.b16 %v158
    %v443 = vunpack.c.l.b16 %v159
    %v444 = vunpack.c.l.b16 %v160
    %v445 = vunpack.c.l.b16 %v161
    %v446 = vunpack.c.l.b16 %v162
    %v447 = vunpack.c.l.b16 %v163
    %v448 = vunpack.c.l.b16 %v164
    %v449 = vunpack.c.l.b16 %v165
    %v450 = vunpack.c.l.b16 %v166
    %v451 = vpack.c.b16 %v324, %v323
    %v452 = vpack.c.b16 %v326, %v325
    %v453 = vpack.c.b16 %v328, %v327
    %v454 = vpack.c.b16 %v330, %v329
    %v455 = vpack.c.b16 %v332, %v331
    %v456 = vpack.c.b16 %v334, %v333
    %v457 = vpack.c.b16 %v336, %v335
    %v458 = vpack.c.b16 %v338, %v337
    %v459 = vpack.c.b16 %v340, %v339
    %v460 = vpack.c.b16 %v342, %v341
    %v461 = vpack.c.b16 %v344, %v343
    %v462 = vpack.c.b16 %v346, %v345
    %v463 = vpack.c.b16 %v348, %v347
    %v464 = vpack.c.b16 %v350, %v349
    %v465 = vpack.c.b16 %v352, %v351
    %v466 = vpack.c.b16 %v354, %v353
    %v467 = vpack.c.b16 %v356, %v355
    %v468 = vpack.c.b16 %v358, %v357
    %v469 = vpack.c.b16 %v360, %v359
    %v470 = vpack.c.b16 %v362, %v361
    %v471 = vpack.c.b16 %v364, %v363
    %v472 = vpack.c.b16 %v366, %v365
    %v473 = vpack.c.b16 %v368, %v367
    %v474 = vpack.c.b16 %v370, %v369
    %v475 = vpack.c.b16 %v372, %v371
    %v476 = vpack.c.b16 %v374, %v373
    %v477 = vpack.c.b16 %v376, %v375
    %v478 = vpack.c.b16 %v378, %v377
    %v479 = vpack.c.b16 %v380, %v379
    %v480 = vpack.c.b16 %v382, %v381
    %v481 = vpack.c.b16 %v384, %v383
    %v482 = vpack.c.b16 %v386, %v385
    %v483 = vpack.c.b16 %v388, %v387
    %v484 = vpack.c.b16 %v390, %v389
    %v485 = vpack.c.b16 %v392, %v391
    %v486 = vpack.c.b16 %v394, %v393
    %v487 = vpack.c.b16 %v396, %v395
    %v488 = vpack.c.b16 %v398, %v397
    %v489 = vpack.c.b16 %v400, %v399
    %v490 = vpack.c.b16 %v402, %v401
    %v491 = vpack.c.b16 %v404, %v403
    %v492 = vpack.c.b16 %v406, %v405
    %v493 = vpack.c.b16 %v408, %v407
    %v494 = vpack.c.b16 %v410, %v409
    %v495 = vpack.c.b16 %v412, %v411
    %v496 = vpack.c.b16 %v414, %v413
    %v497 = vpack.c.b16 %v416, %v415
    %v498 = vpack.c.b16 %v418, %v417
    %v499 = vpack.c.b16 %v420, %v419
    %v500 = vpack.c.b16 %v422, %v421
    %v501 = vpack.c.b16 %v424, %v423
    %v502 = vpack.c.b16 %v426, %v425
    %v503 = vpack.c.b16 %v428, %v427
    %v504 = vpack.c.b16 %v430, %v429
    %v505 = vpack.c.b16 %v432, %v431
    %v506 = vpack.c.b16 %v434, %v433
    %v507 = vpack.c.b16 %v436, %v435
    %v508 = vpack.c.b16 %v438, %v437
    %v509 = vpack.c.b16 %v440, %v439
    %v510 = vpack.c.b16 %v442, %v441
    %v511 = vpack.c.b16 %v444, %v443
    %v512 = vpack.c.b16 %v446, %v445
    %v513 = vpack.c.b16 %v448, %v447
    %v514 = vpack.c.b16 %v450, %v449
    %579 = vmatprep.subr.bf16.mxu0 0
    %580 = vmatpush1.bf16.msra.mxu0 %v451
    %581 = vmatprep.subr.bf16.mxu0 0
    %582 = vmatpush1.bf16.msra.mxu0 %v452
    %583 = vmatprep.subr.bf16.mxu0 0
    %584 = vmatpush1.bf16.msra.mxu0 %v453
    %585 = vmatprep.subr.bf16.mxu0 0
    %586 = vmatpush1.bf16.msra.mxu0 %v454
    %587 = vmatprep.subr.bf16.mxu0 0
    %588 = vmatpush1.bf16.msra.mxu0 %v455
    %589 = vmatprep.subr.bf16.mxu0 0
    %590 = vmatpush1.bf16.msra.mxu0 %v456
    %591 = vmatprep.subr.bf16.mxu0 0
    %592 = vmatpush1.bf16.msra.mxu0 %v457
    %593 = vmatprep.subr.bf16.mxu0 0
    %594 = vmatpush1.bf16.msra.mxu0 %v458
    %595 = vmatprep.subr.bf16.mxu0 0
    %596 = vmatpush1.bf16.msra.mxu0 %v459
    %597 = vmatprep.subr.bf16.mxu0 0
    %598 = vmatpush1.bf16.msra.mxu0 %v460
    %599 = vmatprep.subr.bf16.mxu0 0
    %600 = vmatpush1.bf16.msra.mxu0 %v461
    %601 = vmatprep.subr.bf16.mxu0 0
    %602 = vmatpush1.bf16.msra.mxu0 %v462
    %603 = vmatprep.subr.bf16.mxu0 0
    %604 = vmatpush1.bf16.msra.mxu0 %v463
    %605 = vmatprep.subr.bf16.mxu0 0
    %606 = vmatpush1.bf16.msra.mxu0 %v464
    %607 = vmatprep.subr.bf16.mxu0 0
    %608 = vmatpush1.bf16.msra.mxu0 %v465
    %609 = vmatprep.subr.bf16.mxu0 0
    %610 = vmatpush1.bf16.msra.mxu0 %v466
    %611 = vmatprep.mubr.bf16.mxu0 %v180
    %612 = vmatmul.mubr.bf16.gmra.mrb[0].mxu0 %v179
    %v613 = vpop.f32.mrb[0].mxu0
    %v614 = vadd.f32 0.0, %v613
    %v615 = vpop.f32.mrb[0].mxu0
    %v616 = vpop.f32.mrb[0].mxu0
    %v617 = vpop.f32.mrb[0].mxu0
    %618 = vdwg.mxu0
    %619 = vmatprep.subr.bf16.mxu0 0
    %620 = vmatpush1.bf16.msra.mxu0 %v467
    %621 = vmatprep.subr.bf16.mxu0 0
    %622 = vmatpush1.bf16.msra.mxu0 %v468
    %623 = vmatprep.subr.bf16.mxu0 0
    %624 = vmatpush1.bf16.msra.mxu0 %v469
    %625 = vmatprep.subr.bf16.mxu0 0
    %626 = vmatpush1.bf16.msra.mxu0 %v470
    %627 = vmatprep.subr.bf16.mxu0 0
    %628 = vmatpush1.bf16.msra.mxu0 %v471
    %629 = vmatprep.subr.bf16.mxu0 0
    %630 = vmatpush1.bf16.msra.mxu0 %v472
    %631 = vmatprep.subr.bf16.mxu0 0
    %632 = vmatpush1.bf16.msra.mxu0 %v473
    %633 = vmatprep.subr.bf16.mxu0 0
    %634 = vmatpush1.bf16.msra.mxu0 %v474
    %635 = vmatprep.subr.bf16.mxu0 0
    %636 = vmatpush1.bf16.msra.mxu0 %v475
    %637 = vmatprep.subr.bf16.mxu0 0
    %638 = vmatpush1.bf16.msra.mxu0 %v476
    %639 = vmatprep.subr.bf16.mxu0 0
    %640 = vmatpush1.bf16.msra.mxu0 %v477
    %641 = vmatprep.subr.bf16.mxu0 0
    %642 = vmatpush1.bf16.msra.mxu0 %v478
    %643 = vmatprep.subr.bf16.mxu0 0
    %644 = vmatpush1.bf16.msra.mxu0 %v479
    %645 = vmatprep.subr.bf16.mxu0 0
    %646 = vmatpush1.bf16.msra.mxu0 %v480
    %647 = vmatprep.subr.bf16.mxu0 0
    %648 = vmatpush1.bf16.msra.mxu0 %v481
    %649 = vmatprep.subr.bf16.mxu0 0
    %650 = vmatpush1.bf16.msra.mxu0 %v482
    %651 = vmatprep.mubr.bf16.mxu0 %v182
    %652 = vmatmul.mubr.bf16.gmra.mrb[0].mxu0 %v181
    %v653 = vpop.f32.mrb[0].mxu0
    %v654 = vadd.f32 %v614, %v653
    %v655 = vpop.f32.mrb[0].mxu0
    %v656 = vpop.f32.mrb[0].mxu0
    %v657 = vpop.f32.mrb[0].mxu0
    %658 = vdwg.mxu0
    %659 = vmatprep.subr.bf16.mxu0 0
    %660 = vmatpush1.bf16.msra.mxu0 %v483
    %661 = vmatprep.subr.bf16.mxu0 0
    %662 = vmatpush1.bf16.msra.mxu0 %v484
    %663 = vmatprep.subr.bf16.mxu0 0
    %664 = vmatpush1.bf16.msra.mxu0 %v485
    %665 = vmatprep.subr.bf16.mxu0 0
    %666 = vmatpush1.bf16.msra.mxu0 %v486
    %667 = vmatprep.subr.bf16.mxu0 0
    %668 = vmatpush1.bf16.msra.mxu0 %v487
    %669 = vmatprep.subr.bf16.mxu0 0
    %670 = vmatpush1.bf16.msra.mxu0 %v488
    %671 = vmatprep.subr.bf16.mxu0 0
    %672 = vmatpush1.bf16.msra.mxu0 %v489
    %673 = vmatprep.subr.bf16.mxu0 0
    %674 = vmatpush1.bf16.msra.mxu0 %v490
    %675 = vmatprep.subr.bf16.mxu0 0
    %676 = vmatpush1.bf16.msra.mxu0 %v491
    %677 = vmatprep.subr.bf16.mxu0 0
    %678 = vmatpush1.bf16.msra.mxu0 %v492
    %679 = vmatprep.subr.bf16.mxu0 0
    %680 = vmatpush1.bf16.msra.mxu0 %v493
    %681 = vmatprep.subr.bf16.mxu0 0
    %682 = vmatpush1.bf16.msra.mxu0 %v494
    %683 = vmatprep.subr.bf16.mxu0 0
    %684 = vmatpush1.bf16.msra.mxu0 %v495
    %685 = vmatprep.subr.bf16.mxu0 0
    %686 = vmatpush1.bf16.msra.mxu0 %v496
    %687 = vmatprep.subr.bf16.mxu0 0
    %688 = vmatpush1.bf16.msra.mxu0 %v497
    %689 = vmatprep.subr.bf16.mxu0 0
    %690 = vmatpush1.bf16.msra.mxu0 %v498
    %691 = vmatprep.mubr.bf16.mxu0 %v184
    %692 = vmatmul.mubr.bf16.gmra.mrb[0].mxu0 %v183
    %v693 = vpop.f32.mrb[0].mxu0
    %v694 = vadd.f32 %v654, %v693
    %v695 = vpop.f32.mrb[0].mxu0
    %v696 = vpop.f32.mrb[0].mxu0
    %v697 = vpop.f32.mrb[0].mxu0
    %698 = vdwg.mxu0
    %699 = vmatprep.subr.bf16.mxu0 0
    %700 = vmatpush1.bf16.msra.mxu0 %v499
    %701 = vmatprep.subr.bf16.mxu0 0
    %702 = vmatpush1.bf16.msra.mxu0 %v500
    %703 = vmatprep.subr.bf16.mxu0 0
    %704 = vmatpush1.bf16.msra.mxu0 %v501
    %705 = vmatprep.subr.bf16.mxu0 0
    %706 = vmatpush1.bf16.msra.mxu0 %v502
    %707 = vmatprep.subr.bf16.mxu0 0
    %708 = vmatpush1.bf16.msra.mxu0 %v503
    %709 = vmatprep.subr.bf16.mxu0 0
    %710 = vmatpush1.bf16.msra.mxu0 %v504
    %711 = vmatprep.subr.bf16.mxu0 0
    %712 = vmatpush1.bf16.msra.mxu0 %v505
    %713 = vmatprep.subr.bf16.mxu0 0
    %714 = vmatpush1.bf16.msra.mxu0 %v506
    %715 = vmatprep.subr.bf16.mxu0 0
    %716 = vmatpush1.bf16.msra.mxu0 %v507
    %717 = vmatprep.subr.bf16.mxu0 0
    %718 = vmatpush1.bf16.msra.mxu0 %v508
    %719 = vmatprep.subr.bf16.mxu0 0
    %720 = vmatpush1.bf16.msra.mxu0 %v509
    %721 = vmatprep.subr.bf16.mxu0 0
    %722 = vmatpush1.bf16.msra.mxu0 %v510
    %723 = vmatprep.subr.bf16.mxu0 0
    %724 = vmatpush1.bf16.msra.mxu0 %v511
    %725 = vmatprep.subr.bf16.mxu0 0
    %726 = vmatpush1.bf16.msra.mxu0 %v512
    %727 = vmatprep.subr.bf16.mxu0 0
    %728 = vmatpush1.bf16.msra.mxu0 %v513
    %729 = vmatprep.subr.bf16.mxu0 0
    %730 = vmatpush1.bf16.msra.mxu0 %v514
    %731 = vmatprep.mubr.bf16.mxu0 %v186
    %732 = vmatmul.mubr.bf16.gmra.mrb[0].mxu0 %v185
    %v733 = vpop.f32.mrb[0].mxu0
    %v734 = vadd.f32 %v694, %v733
    %v735 = vpop.f32.mrb[0].mxu0
    %v736 = vpop.f32.mrb[0].mxu0
    %v737 = vpop.f32.mrb[0].mxu0
    %738 = vdwg.mxu0
    %p739 = scmp.eq.s32.totalorder 0, 0
    // Predicated region
    $region26: #{classifier_forward.1} parent=1 // pred_check
      %p740 = pneg %p739
    $region27: #{classifier_forward.1} parent=1 // pred_check_branch
      %742 = sbr.rel (%p740) target = $region29
    $region28: #{classifier_forward.1} parent=1 // pred_region
      %743 = vst [vmem:[#allocation2] sm:$0xff] %v734
    $region29: #{classifier_forward.1} parent=1 // pred_fallthru
      _
    %p744 = scmp.gt.s32.totalorder 0, 0
    // Predicated region
    $region30: #{classifier_forward.1} parent=1 // pred_check
      %p745 = pneg %p744
    $region31: #{classifier_forward.1} parent=1 // pred_check_branch
      %747 = sbr.rel (%p745) target = $region33
    $region32: #{classifier_forward.1} parent=1 // pred_region
      %v748 = vld [vmem:[#allocation2] sm:$0xff]
      %v749 = vadd.f32 %v748, %v734
      %750 = vst [vmem:[#allocation2] sm:$0xff] %v749
    $region33: #{classifier_forward.1} parent=1 // pred_fallthru
      _
    // Predicated region
    $region34: #{classifier_forward.1} parent=1 // pred_check
      %p751 = pneg %p739
    $region35: #{classifier_forward.1} parent=1 // pred_check_branch
      %753 = sbr.rel (%p751) target = $region37
    $region36: #{classifier_forward.1} parent=1 // pred_region
      %v754 = vld [vmem:[#allocation2] sm:$0xff]
      %v755 = vld [vmem:[%s2] sm:$0x1]
      %v757 = vlaneseq
      %v758 = vshrl.u32 %v757, 7
      %v759 = vsub.s32 0, %v758
      %v760 = vrot.slane %v755, %v759
      %v762 = vadd.f32 %v754, %v760
      %v763 = vmax.f32 %v762, 0.0
      %v764 = vpack.c.bf16 %v763, %v763
      %v765 = vld [vmem:[%s3] sm:$0xf]
      %v766 = vld [vmem:[%s3 + $0x4] sm:$0xf]
      %v767 = vld [vmem:[%s3 + $0x8] sm:$0xf]
      %v768 = vld [vmem:[%s3 + $0xc] sm:$0xf]
      %v769 = vld [vmem:[%s3 + $0x10] sm:$0xf]
      %v770 = vld [vmem:[%s3 + $0x14] sm:$0xf]
      %v771 = vld [vmem:[%s3 + $0x18] sm:$0xf]
      %v772 = vld [vmem:[%s3 + $0x1c] sm:$0xf]
      %v773 = vld [vmem:[%s3 + $0x20] sm:$0xf]
      %v774 = vld [vmem:[%s3 + $0x24] sm:$0xf]
      %v775 = vld [vmem:[%s3 + $0x28] sm:$0xf]
      %v776 = vld [vmem:[%s3 + $0x2c] sm:$0xf]
      %v777 = vld [vmem:[%s3 + $0x30] sm:$0xf]
      %v778 = vld [vmem:[%s3 + $0x34] sm:$0xf]
      %v779 = vld [vmem:[%s3 + $0x38] sm:$0xf]
      %v780 = vld [vmem:[%s3 + $0x3c] sm:$0xf]
      %v781 = vld [vmem:[%s4] sm:$0x1]
      %v783 = vlaneseq
      %v784 = vshrl.u32 %v783, 7
      %v785 = vsub.s32 0, %v784
      %v786 = vrot.slane %v781, %v785
      %v804 = vunpack.c.l.b16 %v765
      %v805 = vunpack.c.l.b16 %v766
      %v806 = vunpack.c.l.b16 %v767
      %v807 = vunpack.c.l.b16 %v768
      %v808 = vunpack.c.l.b16 %v769
      %v809 = vunpack.c.l.b16 %v770
      %v810 = vunpack.c.l.b16 %v771
      %v811 = vunpack.c.l.b16 %v772
      %v812 = vunpack.c.l.b16 %v773
      %v813 = vunpack.c.l.b16 %v774
      %v814 = vunpack.c.l.b16 %v775
      %v815 = vunpack.c.l.b16 %v776
      %v816 = vunpack.c.l.b16 %v777
      %v817 = vunpack.c.l.b16 %v778
      %v818 = vunpack.c.l.b16 %v779
      %v819 = vunpack.c.l.b16 %v780
      %v820 = vpack.c.b16 %v805, %v804
      %v821 = vpack.c.b16 %v807, %v806
      %v822 = vpack.c.b16 %v809, %v808
      %v823 = vpack.c.b16 %v811, %v810
      %v824 = vpack.c.b16 %v813, %v812
      %v825 = vpack.c.b16 %v815, %v814
      %v826 = vpack.c.b16 %v817, %v816
      %v827 = vpack.c.b16 %v819, %v818
      %836 = vmatprep.subr.bf16.mxu0 0
      %837 = vmatpush1.bf16.msra.mxu0 %v820
      %838 = vmatprep.subr.bf16.mxu0 0
      %839 = vmatpush1.bf16.msra.mxu0 %v821
      %840 = vmatprep.subr.bf16.mxu0 0
      %841 = vmatpush1.bf16.msra.mxu0 %v822
      %842 = vmatprep.subr.bf16.mxu0 0
      %843 = vmatpush1.bf16.msra.mxu0 %v823
      %844 = vmatprep.subr.bf16.mxu0 0
      %845 = vmatpush1.bf16.msra.mxu0 %v824
      %846 = vmatprep.subr.bf16.mxu0 0
      %847 = vmatpush1.bf16.msra.mxu0 %v825
      %848 = vmatprep.subr.bf16.mxu0 0
      %849 = vmatpush1.bf16.msra.mxu0 %v826
      %850 = vmatprep.subr.bf16.mxu0 0
      %851 = vmatpush1.bf16.msra.mxu0 %v827
      %852 = vmatprep.subr.bf16.mxu0 0
      %853 = vmatpush1.bf16.msra.mxu0 0
      %854 = vmatprep.subr.bf16.mxu0 0
      %855 = vmatpush1.bf16.msra.mxu0 0
      %856 = vmatprep.subr.bf16.mxu0 0
      %857 = vmatpush1.bf16.msra.mxu0 0
      %858 = vmatprep.subr.bf16.mxu0 0
      %859 = vmatpush1.bf16.msra.mxu0 0
      %860 = vmatprep.subr.bf16.mxu0 0
      %861 = vmatpush1.bf16.msra.mxu0 0
      %862 = vmatprep.subr.bf16.mxu0 0
      %863 = vmatpush1.bf16.msra.mxu0 0
      %864 = vmatprep.subr.bf16.mxu0 0
      %865 = vmatpush1.bf16.msra.mxu0 0
      %866 = vmatprep.subr.bf16.mxu0 0
      %867 = vmatpush1.bf16.msra.mxu0 0
      %868 = vmatprep.mubr.bf16.mxu0 0
      %869 = vmatmul.mubr.bf16.gmra.mrb[0].mxu0 %v764
      %v870 = vpop.f32.mrb[0].mxu0
      %v871 = vadd.f32 %v786, %v870
      %v872 = vpop.f32.mrb[0].mxu0
      %v873 = vpop.f32.mrb[0].mxu0
      %v874 = vpop.f32.mrb[0].mxu0
      %875 = vdwg.mxu0
      %876 = vst [vmem:[%s5] sm:$0xff] %v871
    $region37: #{classifier_forward.1} parent=1 // pred_fallthru
      _
    // Predicated region
    $region38: #{classifier_forward.1} parent=1 // pred_check
      _
    $region39: #{classifier_forward.1} parent=1 // pred_check_branch
      %878 = sbr.rel (0) target = $region41
    $region40: #{classifier_forward.1} parent=1 // pred_region
      _
    $region41: #{classifier_forward.1} parent=1 // pred_fallthru
      _
    // Predicated region
    $region42: #{classifier_forward.1} parent=1 // pred_check
      _
    $region43: #{classifier_forward.1} parent=1 // pred_check_branch
      %880 = sbr.rel (0) target = $region45
    $region44: #{classifier_forward.1} parent=1 // pred_region
      _
    $region45: #{classifier_forward.1} parent=1 // pred_fallthru
      _
    %881 = vsyncpa [#allocation4], 1

</llo_original>
